<compile_context>
chip_gen: v7x
topology: tpu7x:2x2x1
jax: 0.10.0
libtpu: 0.0.40
codegen_flags: <defaults>
</compile_context>

<pallas_src>
import functools

import jax
import jax.numpy as jnp
from jax.experimental import pallas as pl
from jax.experimental.pallas import tpu as pltpu


def _round_up(x, m):
    return ((x + m - 1) // m) * m


def _ce_ls_kernel(x_ref, t_ref, o_ref, *, epsilon, num_classes, n_total,
                  block_rows):
    # x_ref: (TN, C) logits tile (native dtype) in VMEM
    # t_ref: (TN, 1) int32 labels tile in VMEM
    # o_ref: (1, 1)  f32 per-tile partial sum in SMEM
    i = pl.program_id(0)

    x = x_ref[...]                                   # native dtype (bf16/f32)
    tn, c = x.shape
    labels = t_ref[...]                              # (TN, 1) int32

    # Single (1, C) class-index iota; the compare broadcasts against labels.
    cls_ids = jax.lax.broadcasted_iota(jnp.int32, (1, c), 1)
    is_tgt = cls_ids == labels                       # (TN, C) bool

    # Numerically-stable logsumexp; exp in native dtype, accumulate in f32.
    m = jnp.max(x, axis=1, keepdims=True)            # (TN, 1)
    shifted = x - m                                  # (TN, C) native dtype
    sum_exp = jnp.sum(jnp.exp(shifted), axis=1, keepdims=True,
                      dtype=jnp.float32)             # (TN, 1) f32
    lse = jnp.log(sum_exp)                           # (TN, 1) f32

    # Fused weighted reduction replacing (one-hot + class-sum) reductions.
    off_w = epsilon / num_classes
    on_w = (1.0 - epsilon) + off_w
    w = jnp.where(is_tgt, on_w, off_w).astype(x.dtype)            # (TN, C)
    wsum = jnp.sum(w * shifted, axis=1, keepdims=True,
                   dtype=jnp.float32)                              # (TN, 1)

    per_row = lse - wsum                                           # (TN, 1)

    # Mask rows of the (possibly partial) last tile; garbage rows may hold
    # anything (even NaN) but where() does not propagate the unselected side.
    row_ids = i * block_rows + jax.lax.broadcasted_iota(jnp.int32, (tn, 1), 0)
    per_row = jnp.where(row_ids < n_total, per_row, 0.0)

    o_ref[0, 0] = jnp.sum(per_row)


def cross_entropy_label_smooth(inputs, targets, *, num_classes, epsilon,
                               block_rows=1024):
    """inputs: (N, C) logits (bf16 or f32); targets: (N,) int labels.

    Returns the scalar label-smoothed cross-entropy, identical to the PyTorch
    module: (-smoothed_onehot * log_softmax(inputs, dim=1)).mean(0).sum().
    """
    n, c = inputs.shape
    assert c == num_classes

    # Row tile: either the full batch (legal block even if N % 8 != 0) or a
    # multiple of 8.  If a single tile would cover everything, split in two so
    # both v7x TensorCores get work on the "parallel" batch axis.
    tn = min(block_rows, n)
    if n > 8 and pl.cdiv(n, tn) < 2:
        half = _round_up(pl.cdiv(n, 2), 8)
        if half < n:
            tn = half
    num_tiles = pl.cdiv(n, tn)

    t2d = targets.astype(jnp.int32).reshape(n, 1)

    itemsize = jnp.dtype(inputs.dtype).itemsize
    cost = pl.CostEstimate(
        flops=6 * n * c,                       # max/sub/select/mul + 2 reduces
        transcendentals=n * c + n,             # exp per element + log per row
        bytes_accessed=n * c * itemsize + n * 4 + num_tiles * 4,
    )

    partials = pl.pallas_call(
        functools.partial(
            _ce_ls_kernel,
            epsilon=float(epsilon),
            num_classes=num_classes,
            n_total=n,
            block_rows=tn,
        ),
        grid=(num_tiles,),
        out_shape=jax.ShapeDtypeStruct((num_tiles, 1), jnp.float32),
        in_specs=[
            pl.BlockSpec((tn, c), lambda i: (i, 0)),   # logits, native dtype
            pl.BlockSpec((tn, 1), lambda i: (i, 0)),   # labels
        ],
        out_specs=pl.BlockSpec((1, 1), lambda i: (i, 0),
                               memory_space=pltpu.SMEM),
        compiler_params=pltpu.CompilerParams(
            dimension_semantics=("parallel",),
        ),
        cost_estimate=cost,
    )(inputs, t2d)

    # Tiny cross-tile reduction + mean(0) normalization in JAX.
    return jnp.sum(partials) / jnp.float32(n)


def _ref_loss(x, t, num_classes, epsilon):
    log_probs = jax.nn.log_softmax(x.astype(jnp.float32), axis=1)
    one_hot = jax.nn.one_hot(t, num_classes, dtype=jnp.float32)
    smoothed = (1.0 - epsilon) * one_hot + epsilon / num_classes
    return jnp.sum(jnp.mean(-smoothed * log_probs, axis=0))


if __name__ == "__main__":
    epsilon = 0.1

    # --- small f32 case (batch=8, classes=32) ---
    num_classes = 32
    batch = 8
    key = jax.random.PRNGKey(0)
    k_logits, k_labels, k2_logits, k2_labels = jax.random.split(key, 4)
    inputs = jax.random.normal(k_logits, (batch, num_classes), dtype=jnp.float32)
    targets = jax.random.randint(k_labels, (batch,), 0, num_classes,
                                 dtype=jnp.int32)

    loss = cross_entropy_label_smooth(
        inputs, targets, num_classes=num_classes, epsilon=epsilon)
    jax.block_until_ready(loss)
    ref = _ref_loss(inputs, targets, num_classes, epsilon)
    assert jnp.allclose(loss, ref, atol=1e-5, rtol=1e-5), (loss, ref)

    # --- bf16 logits path: native bf16 compute in-kernel, f32 accumulation ---
    inputs_bf16 = inputs.astype(jnp.bfloat16)
    loss_bf16 = cross_entropy_label_smooth(
        inputs_bf16, targets, num_classes=num_classes, epsilon=epsilon)
    jax.block_until_ready(loss_bf16)
    ref_bf16 = _ref_loss(inputs_bf16, targets, num_classes, epsilon)
    assert jnp.allclose(loss_bf16, ref_bf16, atol=2e-2, rtol=2e-2), (
        loss_bf16, ref_bf16)

    # --- ImageNet-like class count, ragged batch: exercises the unpadded
    #     C=1000 block (not a multiple of 128) and the partial row tile ---
    num_classes2 = 1000
    batch2 = 50
    inputs2 = jax.random.normal(k2_logits, (batch2, num_classes2),
                                dtype=jnp.float32)
    targets2 = jax.random.randint(k2_labels, (batch2,), 0, num_classes2,
                                  dtype=jnp.int32)
    loss2 = cross_entropy_label_smooth(
        inputs2, targets2, num_classes=num_classes2, epsilon=epsilon)
    jax.block_until_ready(loss2)
    ref2 = _ref_loss(inputs2, targets2, num_classes2, epsilon)
    assert jnp.allclose(loss2, ref2, atol=1e-4, rtol=1e-4), (loss2, ref2)

    print("KERNEL_OK")
</pallas_src>

<mosaic_0001>
module attributes {stable_mosaic.version = 11 : i64} {
  func.func @_ce_ls_kernel(%arg0: i32, %arg1: memref<8x32xf32, #tpu.memory_space<vmem>>, %arg2: memref<8x1xi32, #tpu.memory_space<vmem>>, %arg3: memref<1x1xf32, #tpu.memory_space<smem>>) attributes {dimension_semantics = [#tpu.dimension_semantics<parallel>], iteration_bounds = array<i64: 1>, scalar_prefetch = 0 : i64, scratch_operands = 0 : i64, tpu.core_type = #tpu.core_type<tc>, window_params = [{transform_indices = @transform_0, window_bounds = array<i64: 8, 32>}, {transform_indices = @transform_1, window_bounds = array<i64: 8, 1>}, {transform_indices = @transform_2, window_bounds = array<i64: 1, 1>}]} {
    %c0 = arith.constant 0 : index
    %c0_0 = arith.constant 0 : index
    %0 = vector.load %arg1[%c0, %c0_0] : memref<8x32xf32, #tpu.memory_space<vmem>>, vector<8x32xf32>
    %c0_1 = arith.constant 0 : index
    %c0_2 = arith.constant 0 : index
    %1 = vector.load %arg2[%c0_1, %c0_2] : memref<8x1xi32, #tpu.memory_space<vmem>>, vector<8x1xi32>
    %2 = tpu.iota {dimensions = array<i32: 1>} : vector<1x32xi32>
    %3 = vector.broadcast %2 : vector<1x32xi32> to vector<8x32xi32>
    %4 = vector.broadcast %1 : vector<8x1xi32> to vector<8x32xi32>
    %5 = arith.cmpi eq, %3, %4 : vector<8x32xi32>
    %cst = arith.constant dense<0xFF800000> : vector<8xf32>
    %6 = vector.multi_reduction <maximumf>, %0, %cst [1] : vector<8x32xf32> to vector<8xf32>
    %7 = vector.shape_cast %6 : vector<8xf32> to vector<8x1xf32>
    %8 = vector.broadcast %7 : vector<8x1xf32> to vector<8x32xf32>
    %9 = arith.subf %0, %8 : vector<8x32xf32>
    %10 = math.exp %9 : vector<8x32xf32>
    %cst_3 = arith.constant dense<0.000000e+00> : vector<8xf32>
    %11 = vector.multi_reduction <add>, %10, %cst_3 [1] : vector<8x32xf32> to vector<8xf32>
    %12 = vector.shape_cast %11 : vector<8xf32> to vector<8x1xf32>
    %13 = math.log %12 : vector<8x1xf32>
    %cst_4 = arith.constant 0.903124988 : f32
    %cst_5 = arith.constant 3.125000e-03 : f32
    %14 = vector.broadcast %cst_4 : f32 to vector<8x32xf32>
    %15 = vector.broadcast %cst_5 : f32 to vector<8x32xf32>
    %16 = arith.select %5, %14, %15 : vector<8x32xi1>, vector<8x32xf32>
    %17 = arith.mulf %16, %9 : vector<8x32xf32>
    %cst_6 = arith.constant dense<0.000000e+00> : vector<8xf32>
    %18 = vector.multi_reduction <add>, %17, %cst_6 [1] : vector<8x32xf32> to vector<8xf32>
    %19 = vector.shape_cast %18 : vector<8xf32> to vector<8x1xf32>
    %20 = arith.subf %13, %19 : vector<8x1xf32>
    %c8_i32 = arith.constant 8 : i32
    %21 = arith.muli %arg0, %c8_i32 : i32
    %22 = tpu.iota {dimensions = array<i32: 0>} : vector<8x1xi32>
    %23 = vector.broadcast %21 : i32 to vector<8x1xi32>
    %24 = arith.addi %23, %22 : vector<8x1xi32>
    %c8_i32_7 = arith.constant 8 : i32
    %25 = vector.broadcast %c8_i32_7 : i32 to vector<8x1xi32>
    %26 = arith.cmpi slt, %24, %25 : vector<8x1xi32>
    %cst_8 = arith.constant 0.000000e+00 : f32
    %27 = vector.broadcast %cst_8 : f32 to vector<8x1xf32>
    %28 = arith.select %26, %20, %27 : vector<8x1xi1>, vector<8x1xf32>
    %29 = vector.shape_cast %28 : vector<8x1xf32> to vector<1x8x1xf32>
    %cst_9 = arith.constant dense<0.000000e+00> : vector<1xf32>
    %30 = vector.multi_reduction <add>, %29, %cst_9 [1, 2] : vector<1x8x1xf32> to vector<1xf32>
    %31 = vector.shape_cast %30 : vector<1xf32> to vector<1x1x1xf32>
    %32 = vector.extract %31[0, 0, 0] : f32 from vector<1x1x1xf32>
    %c0_10 = arith.constant 0 : index
    %c0_11 = arith.constant 0 : index
    %33 = memref.load %arg3[%c0_10, %c0_11] : memref<1x1xf32, #tpu.memory_space<smem>>
    memref.store %32, %arg3[%c0_10, %c0_11] : memref<1x1xf32, #tpu.memory_space<smem>>
    return
  }
  func.func @transform_0(%arg0: i32) -> (i32, i32) {
    %c0_i32 = arith.constant 0 : i32
    %c0_i32_0 = arith.constant 0 : i32
    return %arg0, %c0_i32 : i32, i32
  }
  func.func @transform_1(%arg0: i32) -> (i32, i32) {
    %c0_i32 = arith.constant 0 : i32
    %c0_i32_0 = arith.constant 0 : i32
    return %arg0, %c0_i32 : i32, i32
  }
  func.func @transform_2(%arg0: i32) -> (i32, i32) {
    %c0_i32 = arith.constant 0 : i32
    %c0_i32_0 = arith.constant 0 : i32
    return %arg0, %c0_i32 : i32, i32
  }
}

</mosaic_0001>

<llo_original>
// kernel: tpu_custom_call.1
$region0: #{tpu_custom_call.1}
  #allocation0 [shape = 'u32[]', space=smem, size = 0x4, offset = 0x4, fixed_abs, tag = 'smem constant byte address 0x4 - core index']
  #allocation1 [shape = 'u32[144,128]{1,0:T(1,128)}', space=vmem, size = 0x12000, scoped, tag = 'internal scratch']
  %s0 = inlined_call_operand.vmem [shape: f32[8,32], index: 0, kind: input, shape index: {}]
  %s1 = inlined_call_operand.vmem [shape: s32[8,1], index: 1, kind: input, shape index: {}]
  %s2 = inlined_call_operand.hbm [shape: f32[1,1], index: 2, kind: output, shape index: {}]
  %s3 = sld [smem:[#allocation0]]
  $region18: #{tpu_custom_call.1} parent=0
    _
  %s5 = ssub.s32 1, %s3
  %s6 = scalar_select 0, %s5, %s3
  $region1: #{tpu_custom_call.1} parent=0
    #allocation2 [shape = 'u8[512]{0}', space=smem, size = 0x200, scoped, tag = 'output window, operand 0, single buffered']
    #allocation3 [shape = 's32[1]{0}', space=sflag, size = 0x4, scoped, tag = 'scoped memory for tpu_custom_call.1']
    %7 = vsyncpa [#allocation3], 0
    // Predicated region
    $region2: #{tpu_custom_call.1} parent=1 // pred_check
      _
    $region3: #{tpu_custom_call.1} parent=1 // pred_check_branch
      %9 = sbr.rel (0) target = $region5
    $region4: #{tpu_custom_call.1} parent=1 // pred_region
      _
    $region5: #{tpu_custom_call.1} parent=1 // pred_fallthru
      _
    // Predicated region
    $region6: #{tpu_custom_call.1} parent=1 // pred_check
      _
    $region7: #{tpu_custom_call.1} parent=1 // pred_check_branch
      %11 = sbr.rel (0) target = $region9
    $region8: #{tpu_custom_call.1} parent=1 // pred_region
      _
    $region9: #{tpu_custom_call.1} parent=1 // pred_fallthru
      _
    %v12 = vld [vmem:[%s0] sm:$0xff]
    %v13 = vld [vmem:[%s1] sm:$0xff]
    %v14 = vlaneseq
    %v15 = vand.u32 %v14, 127
    %16 = vset.pattern.permute.xlu0 0
    %17 = vperm.xlu0 %16, %v13
    %v18 = vpop.permute.xlu0 %17
    %vm19 = vcmp.eq.s32.totalorder %v15, %v18
    %vm20 = vcmask 261120
    %v21 = vsel %vm20, %v12, -inf
    %22 = vmax.xlane.f32.xlu0 %v21
    %v23 = vpop.xlane.xlu0 %22
    %v24 = vsub.f32 %v12, %v23
    %v25 = vmul.f32 %v24, 1.442695
    %v26 = vpow.pop %v25
    %v27 = vsel %vm20, %v26, 0.0
    %28 = vadd.xlane.f32.xlu0 %v27
    %v29 = vpop.xlane.xlu0 %28
    %v30 = vlog2.pop %v29
    %v31 = vmul.f32 %v30, 0.6931472
    %v32 = vsel %vm19, 0.903125, 0.003125
    %v33 = vmul.f32 %v32, %v24
    %v34 = vsel %vm20, %v33, 0.0
    %35 = vadd.xlane.f32.xlu0 %v34
    %v36 = vpop.xlane.xlu0 %35
    %v37 = vsub.f32 %v31, %v36
    %s38 = smul.u32 0, 8
    %v39 = vlaneseq
    %v40 = vshrl.u32 %v39, 7
    %v41 = vstv %s38
    %v42 = vadd.s32 %v41, %v40
    %vm43 = vcmp.lt.s32.totalorder %v42, 8
    %v44 = vsel %vm43, %v37, 0.0
    %vm45 = vcmask 7168
    %v46 = vsel %vm45, %v44, 0.0
    %47 = vadd.xlane.f32.xlu0 %v46
    %v48 = vpop.xlane.xlu0 %47
    %v49 = vrot.slane %v48, 4
    %v50 = vadd.f32 %v48, %v49
    %v51 = vrot.slane %v50, 2
    %v52 = vadd.f32 %v50, %v51
    %v53 = vrot.slane %v52, 1
    %v54 = vadd.f32 %v52, %v53
    %s55 = vtos %v54
    %s56 = scalar_lea.smem [#allocation2], 0
    %57 = sst [smem:[%s56]] %s55
    // Predicated region
    $region10: #{tpu_custom_call.1} parent=1 // pred_check
      _
    $region11: #{tpu_custom_call.1} parent=1 // pred_check_branch
      %59 = sbr.rel (0) target = $region13
    $region12: #{tpu_custom_call.1} parent=1 // pred_region
      %s61 = ssub.s32 16, 16
      %62 = vsyncadd [#allocation3], %s61
      %65 = dma.smem_to_hbm [#allocation2], 16, %s2, [#allocation3]
    $region13: #{tpu_custom_call.1} parent=1 // pred_fallthru
      _
    // Predicated region
    $region14: #{tpu_custom_call.1} parent=1 // pred_check
      _
    $region15: #{tpu_custom_call.1} parent=1 // pred_check_branch
      %67 = sbr.rel (0) target = $region17
    $region16: #{tpu_custom_call.1} parent=1 // pred_region
      %68 = dma.done [#allocation3], 16
    $region17: #{tpu_custom_call.1} parent=1 // pred_fallthru
      _
    %69 = sfence
    %70 = vsyncpa [#allocation3], 1

</llo_original>
